<compile_context>
chip_gen: v5e
topology: v5e:2x2
jax: 0.10.0
libtpu: 0.0.40
codegen_flags: <defaults>
</compile_context>

<pallas_src>
import functools

import jax
import jax.numpy as jnp
from jax.experimental import pallas as pl
from jax.experimental.pallas import tpu as pltpu


def _round_up(a, b):
    return (a + b - 1) // b * b


def _adain_kernel(x_ref, ms_ref, o_ref, *, hw_actual):
    # x_ref:  (row_tile, hw_pad)  one row per (n, c) pair
    # ms_ref: (row_tile, 2)       column 0 = target mean, column 1 = target std
    x = x_ref[...].astype(jnp.float32)
    hw_pad = x.shape[1]

    # Padded lanes (if any) are zero-filled by the wrapper, so the raw sum is
    # already the exact spatial sum.
    mean = jnp.sum(x, axis=1, keepdims=True) / hw_actual
    diff = x - mean

    if hw_actual == hw_pad:
        var_sum = jnp.sum(diff * diff, axis=1, keepdims=True)
    else:
        # In the padded region diff == -mean, so the variance sum must mask it.
        idx = jax.lax.broadcasted_iota(jnp.int32, x.shape, 1)
        dvm = jnp.where(idx < hw_actual, diff, 0.0)
        var_sum = jnp.sum(dvm * dvm, axis=1, keepdims=True)

    # epsilon placement matches the PyTorch code exactly: (sum + 2.3e-8) / (H*W).
    # rsqrt runs on the EUP (its own VLIW slot); the per-element tail is then a
    # single fused mul + add on the VPU.
    inv_std = jax.lax.rsqrt((var_sum + 2.3e-08) / hw_actual)

    ms = ms_ref[...].astype(jnp.float32)
    mu = ms[:, 0:1]                               # (row_tile, 1)
    sigma = ms[:, 1:2]                            # (row_tile, 1)
    scale = sigma * inv_std                       # (row_tile, 1)

    o_ref[...] = (diff * scale + mu).astype(o_ref.dtype)


def adain_forward(x, mu, sigma):
    """x: (N, C, H, W);  mu, sigma: (N, C).  Returns (N, C, H, W)."""
    N, C, H, W = x.shape
    rows = N * C
    hw = H * W
    itemsize = jnp.dtype(x.dtype).itemsize

    # Lane-dense spatial axis (multiple of 128) for unmasked vector stores.
    hw_pad = _round_up(hw, 128)
    bytes_per_row = hw_pad * itemsize

    # VMEM-aware tile: ~4 MiB per x tile (double-buffered in + out ~= 16 MiB),
    # safe under the 32 MiB scoped-VMEM limit requested below.
    TARGET_TILE_BYTES = 4 * 1024 * 1024
    row_tile = max(8, (TARGET_TILE_BYTES // bytes_per_row) // 8 * 8)
    # TODO(synk): for very large H*W where even an 8-row tile exceeds VMEM, add
    # a second "arbitrary" grid axis over hw with sum / sum-of-squares
    # accumulators instead of requiring the full spatial extent in one block.

    rows8 = _round_up(rows, 8)
    row_tile = min(row_tile, rows8)
    if row_tile == rows8 and rows8 >= 16:
        # Keep >=2 parallel grid steps so both v7x TensorCores get work.
        row_tile = _round_up((rows8 + 1) // 2, 8)
    rows_pad = _round_up(rows, row_tile)
    grid = (rows_pad // row_tile,)

    x2 = x.reshape(rows, hw)
    if rows_pad != rows or hw_pad != hw:
        x2 = jnp.pad(x2, ((0, rows_pad - rows), (0, hw_pad - hw)))

    # Pack style mean/std into one array -> a single small DMA per grid step.
    ms2 = jnp.stack([mu.reshape(rows), sigma.reshape(rows)], axis=1)  # (rows, 2)
    if rows_pad != rows:
        ms2 = jnp.pad(ms2, ((0, rows_pad - rows), (0, 0)))

    kernel = functools.partial(_adain_kernel, hw_actual=hw)

    out2 = pl.pallas_call(
        kernel,
        out_shape=jax.ShapeDtypeStruct((rows_pad, hw_pad), x.dtype),
        grid=grid,
        in_specs=[
            pl.BlockSpec((row_tile, hw_pad), lambda i: (i, 0)),
            pl.BlockSpec((row_tile, 2), lambda i: (i, 0)),
        ],
        out_specs=pl.BlockSpec((row_tile, hw_pad), lambda i: (i, 0)),
        compiler_params=pltpu.CompilerParams(
            dimension_semantics=("parallel",),
            vmem_limit_bytes=32 * 1024 * 1024,
        ),
    )(x2, ms2)

    if rows_pad != rows or hw_pad != hw:
        out2 = out2[:rows, :hw]
    return out2.reshape(N, C, H, W)


def _adain_reference(x, mu, sigma):
    """Pure-JAX reference mirroring the PyTorch code literally."""
    N, C, H, W = x.shape
    mu_x = jnp.sum(x, axis=(2, 3)) / (H * W)                        # (N, C)
    diff = x - mu_x[:, :, None, None]
    sigma_x = jnp.sqrt((jnp.sum(diff ** 2, axis=(2, 3)) + 2.3e-08) / (H * W))
    return (sigma[:, :, None, None] * (diff / sigma_x[:, :, None, None])
            + mu[:, :, None, None])


if __name__ == "__main__":
    key = jax.random.PRNGKey(0)
    kx, kmu, ksg = jax.random.split(key, 3)

    N, C, H, W = 2, 4, 16, 16
    x = jax.random.normal(kx, (N, C, H, W), dtype=jnp.float32)
    mu = jax.random.normal(kmu, (N, C), dtype=jnp.float32)
    sigma = jax.random.uniform(ksg, (N, C), dtype=jnp.float32, minval=0.5, maxval=2.0)

    out = adain_forward(x, mu, sigma)
    out = jax.block_until_ready(out)

    ref = _adain_reference(x, mu, sigma)
    assert out.shape == (N, C, H, W)
    assert jnp.allclose(out, ref, atol=1e-5, rtol=1e-5), "mismatch vs reference"

    print("KERNEL_OK")
</pallas_src>

<mosaic_0001>
module attributes {stable_mosaic.version = 11 : i64} {
  func.func @_adain_kernel(%arg0: i32, %arg1: memref<8x256xf32, #tpu.memory_space<vmem>>, %arg2: memref<8x2xf32, #tpu.memory_space<vmem>>, %arg3: memref<8x256xf32, #tpu.memory_space<vmem>>) attributes {dimension_semantics = [#tpu.dimension_semantics<parallel>], iteration_bounds = array<i64: 1>, scalar_prefetch = 0 : i64, scratch_operands = 0 : i64, tpu.core_type = #tpu.core_type<tc>, window_params = [{transform_indices = @transform_0, window_bounds = array<i64: 8, 256>}, {transform_indices = @transform_1, window_bounds = array<i64: 8, 2>}, {transform_indices = @transform_2, window_bounds = array<i64: 8, 256>}]} {
    %c0 = arith.constant 0 : index
    %c0_0 = arith.constant 0 : index
    %0 = vector.load %arg1[%c0, %c0_0] : memref<8x256xf32, #tpu.memory_space<vmem>>, vector<8x256xf32>
    %cst = arith.constant dense<0.000000e+00> : vector<8xf32>
    %1 = vector.multi_reduction <add>, %0, %cst [1] : vector<8x256xf32> to vector<8xf32>
    %2 = vector.shape_cast %1 : vector<8xf32> to vector<8x1xf32>
    %cst_1 = arith.constant 2.560000e+02 : f32
    %3 = vector.broadcast %cst_1 : f32 to vector<8x1xf32>
    %4 = arith.divf %2, %3 : vector<8x1xf32>
    %5 = vector.broadcast %4 : vector<8x1xf32> to vector<8x256xf32>
    %6 = arith.subf %0, %5 : vector<8x256xf32>
    %7 = arith.mulf %6, %6 : vector<8x256xf32>
    %cst_2 = arith.constant dense<0.000000e+00> : vector<8xf32>
    %8 = vector.multi_reduction <add>, %7, %cst_2 [1] : vector<8x256xf32> to vector<8xf32>
    %9 = vector.shape_cast %8 : vector<8xf32> to vector<8x1xf32>
    %cst_3 = arith.constant 2.300000e-08 : f32
    %10 = vector.broadcast %cst_3 : f32 to vector<8x1xf32>
    %11 = arith.addf %9, %10 : vector<8x1xf32>
    %cst_4 = arith.constant 2.560000e+02 : f32
    %12 = vector.broadcast %cst_4 : f32 to vector<8x1xf32>
    %13 = arith.divf %11, %12 : vector<8x1xf32>
    %14 = math.rsqrt %13 : vector<8x1xf32>
    %c0_5 = arith.constant 0 : index
    %c0_6 = arith.constant 0 : index
    %15 = vector.load %arg2[%c0_5, %c0_6] : memref<8x2xf32, #tpu.memory_space<vmem>>, vector<8x2xf32>
    %16 = vector.extract_strided_slice %15 {offsets = [0, 0], sizes = [8, 1], strides = [1, 1]} : vector<8x2xf32> to vector<8x1xf32>
    %17 = vector.extract_strided_slice %15 {offsets = [0, 1], sizes = [8, 1], strides = [1, 1]} : vector<8x2xf32> to vector<8x1xf32>
    %18 = arith.mulf %17, %14 : vector<8x1xf32>
    %19 = vector.broadcast %18 : vector<8x1xf32> to vector<8x256xf32>
    %20 = arith.mulf %6, %19 : vector<8x256xf32>
    %21 = vector.broadcast %16 : vector<8x1xf32> to vector<8x256xf32>
    %22 = arith.addf %20, %21 : vector<8x256xf32>
    %c0_7 = arith.constant 0 : index
    %c0_8 = arith.constant 0 : index
    %23 = vector.load %arg3[%c0_7, %c0_8] : memref<8x256xf32, #tpu.memory_space<vmem>>, vector<8x256xf32>
    tpu.vector_store %arg3[%c0_7, %c0_8], %22 {strides = array<i32>} : memref<8x256xf32, #tpu.memory_space<vmem>>, vector<8x256xf32>,
    return
  }
  func.func @transform_0(%arg0: i32) -> (i32, i32) {
    %c0_i32 = arith.constant 0 : i32
    %c0_i32_0 = arith.constant 0 : i32
    return %arg0, %c0_i32 : i32, i32
  }
  func.func @transform_1(%arg0: i32) -> (i32, i32) {
    %c0_i32 = arith.constant 0 : i32
    %c0_i32_0 = arith.constant 0 : i32
    return %arg0, %c0_i32 : i32, i32
  }
  func.func @transform_2(%arg0: i32) -> (i32, i32) {
    %c0_i32 = arith.constant 0 : i32
    %c0_i32_0 = arith.constant 0 : i32
    return %arg0, %c0_i32 : i32, i32
  }
}

</mosaic_0001>

<llo_original>
// kernel: tpu_custom_call.1
$region0: #{tpu_custom_call.1}
  #allocation0 [shape = 'u32[]', space=smem, size = 0x4, offset = 0x4, fixed_abs, tag = 'smem constant byte address 0x4 - core index']
  #allocation1 [shape = 'u32[72,128]{1,0:T(1,128)}', space=vmem, size = 0x9000, scoped, tag = 'internal scratch']
  %s0 = inlined_call_operand.hbm [shape: f32[8,256], index: 0, kind: input, shape index: {}]
  %s1 = inlined_call_operand.vmem [shape: f32[8,2], index: 1, kind: input, shape index: {}]
  %s2 = inlined_call_operand.hbm [shape: f32[8,256], index: 2, kind: output, shape index: {}]
  %s3 = sld [smem:[#allocation0]]
  $region22: #{tpu_custom_call.1} parent=0
    _
  %s5 = ssub.s32 1, %s3
  %s6 = scalar_select 0, %s5, %s3
  $region1: #{tpu_custom_call.1} parent=0
    #allocation2 [shape = 'u8[8192]{0}', space=vmem, size = 0x2000, scoped, tag = 'input window, operand 0, single buffered']
    #allocation3 [shape = 's32[1]{0}', space=sflag, size = 0x4, scoped, tag = 'scoped memory for tpu_custom_call.1']
    #allocation4 [shape = 's32[1]{0}', space=sflag, size = 0x4, scoped, tag = 'scoped memory for tpu_custom_call.1']
    #allocation5 [shape = 'u8[8192]{0}', space=vmem, size = 0x2000, scoped, tag = 'output window, operand 0, single buffered']
    %7 = vsyncpa [#allocation3], 0
    %8 = vsyncpa [#allocation4], 0
    // Predicated region
    $region2: #{tpu_custom_call.1} parent=1 // pred_check
      _
    $region3: #{tpu_custom_call.1} parent=1 // pred_check_branch
      %10 = sbr.rel (0) target = $region5
    $region4: #{tpu_custom_call.1} parent=1 // pred_region
      %12 = vsyncadd [#allocation3], 0
      %s14 = sshll.u32 %s0, 4
      %s15 = int_to_ptr.hbm [resolvable:$true] %s14
      %s16 = sshll.u32 [#allocation2], 4
      %s17 = int_to_ptr.vmem [resolvable:$true] %s16
      %19 = dma.hbm_to_vmem [thread:$0]  %s15, 256, %s17, [#allocation3]
    $region5: #{tpu_custom_call.1} parent=1 // pred_fallthru
      _
    // Predicated region
    $region6: #{tpu_custom_call.1} parent=1 // pred_check
      _
    $region7: #{tpu_custom_call.1} parent=1 // pred_check_branch
      %21 = sbr.rel (0) target = $region9
    $region8: #{tpu_custom_call.1} parent=1 // pred_region
      _
    $region9: #{tpu_custom_call.1} parent=1 // pred_fallthru
      _
    // Predicated region
    $region10: #{tpu_custom_call.1} parent=1 // pred_check
      _
    $region11: #{tpu_custom_call.1} parent=1 // pred_check_branch
      %23 = sbr.rel (0) target = $region13
    $region12: #{tpu_custom_call.1} parent=1 // pred_region
      %25 = dma.done [#allocation3], 256
    $region13: #{tpu_custom_call.1} parent=1 // pred_fallthru
      _
    %v26 = vld [vmem:[#allocation2] sm:$0xff]
    %v27 = vld [vmem:[#allocation2 + $0x8] sm:$0xff]
    %v28 = vadd.f32 %v26, %v27
    %29 = vadd.xlane.f32.xlu0 %v28
    %v30 = vpop.xlane.xlu0 %29
    %v31 = vrcp.pop 256.0
    %v32 = vmul.f32 256.0, %v31
    %v33 = vsub.f32 1.0, %v32
    %v34 = vmul.f32 %v31, %v33
    %v35 = vadd.f32 %v31, %v34
    %vm36 = vweird.f32 %v31
    %v37 = vsel %vm36, %v31, %v35
    %v38 = vmul.f32 %v30, %v37
    %v39 = vsub.f32 %v26, %v38
    %v40 = vsub.f32 %v27, %v38
    %v41 = vmul.f32 %v39, %v39
    %v42 = vmul.f32 %v40, %v40
    %v43 = vadd.f32 %v41, %v42
    %44 = vadd.xlane.f32.xlu0 %v43
    %v45 = vpop.xlane.xlu0 %44
    %v46 = vadd.f32 %v45, 2.3e-08
    %v47 = vmul.f32 %v46, %v37
    %v48 = vrsqrt.pop %v47
    %v49 = vmul.f32 %v48, %v47
    %v50 = vmul.f32 %v49, %v48
    %v51 = vmul.f32 0.5, %v50
    %v52 = vsub.f32 1.5, %v51
    %v53 = vmul.f32 %v48, %v52
    %vm54 = vweird.f32 %v47
    %vm55 = vweird.f32 %v48
    %vm56 = vmor %vm54, %vm55
    %v57 = vsel %vm56, %v48, %v53
    %v58 = vld [vmem:[%s1] sm:$0xff]
    %v59 = vmul.f32 %v58, %v57
    %61 = vset.pattern.permute.xlu0 1
    %62 = vperm.xlu0 %61, %v59
    %v63 = vpop.permute.xlu0 %62
    %v65 = vmul.f32 %v39, %v63
    %v66 = vmul.f32 %v40, %v63
    %68 = vset.pattern.permute.xlu0 0
    %69 = vperm.xlu0 %68, %v58
    %v70 = vpop.permute.xlu0 %69
    %v72 = vadd.f32 %v65, %v70
    %v73 = vadd.f32 %v66, %v70
    %74 = vst [vmem:[#allocation5] sm:$0xff] %v72
    %75 = vst [vmem:[#allocation5 + $0x8] sm:$0xff] %v73
    // Predicated region
    $region14: #{tpu_custom_call.1} parent=1 // pred_check
      _
    $region15: #{tpu_custom_call.1} parent=1 // pred_check_branch
      %77 = sbr.rel (0) target = $region17
    $region16: #{tpu_custom_call.1} parent=1 // pred_region
      %79 = vsyncadd [#allocation4], 0
      %s81 = sshll.u32 [#allocation5], 4
      %s82 = int_to_ptr.vmem [resolvable:$true] %s81
      %s83 = sshll.u32 %s2, 4
      %s84 = int_to_ptr.hbm [resolvable:$true] %s83
      %86 = dma.vmem_to_hbm [thread:$0]  %s82, 256, %s84, [#allocation4]
    $region17: #{tpu_custom_call.1} parent=1 // pred_fallthru
      _
    // Predicated region
    $region18: #{tpu_custom_call.1} parent=1 // pred_check
      _
    $region19: #{tpu_custom_call.1} parent=1 // pred_check_branch
      %88 = sbr.rel (0) target = $region21
    $region20: #{tpu_custom_call.1} parent=1 // pred_region
      %90 = dma.done [#allocation4], 256
    $region21: #{tpu_custom_call.1} parent=1 // pred_fallthru
      _
    %91 = vsyncpa [#allocation3], 1
    %92 = vsyncpa [#allocation4], 1

</llo_original>
